<compile_context>
chip_gen: v5e
topology: v5e:2x2
jax: 0.10.0
libtpu: 0.0.40
codegen_flags: <defaults>
</compile_context>

<pallas_src>
from functools import partial

import jax
import jax.numpy as jnp
from jax.experimental import pallas as pl
from jax.experimental.pallas import tpu as pltpu


# ----------------------------------------------------------------------------
# Pallas kernel: T-step fused GConvLSTM rollout (grid axis = timestep)
# ----------------------------------------------------------------------------
def _gconv_lstm_seq_kernel(K, Fout,
                           lhat2_ref, x_ref, h0_ref, c0_ref,
                           w_ref, bias_ref, wc_ref,
                           hc_ref, h_scr, c_scr):
    """Refs (per grid step t):
      lhat2_ref : [N, N]                 2 * L_hat, VMEM-resident (constant index_map)
      x_ref     : [1, N, Fin]            X_t (streamed per step), f32
      h0_ref    : [N, Fout]              initial hidden state, f32 (read at t==0)
      c0_ref    : [N, Fout]              initial cell state, f32 (read at t==0)
      w_ref     : [K*(Fin+Fout), 4*Fout] tap- and gate-stacked Cheb weights (i|f|c|o)
      bias_ref  : [1, 4*Fout]            folded bx + bh + b_gate, f32
      wc_ref    : [1, 4*Fout]            peephole [w_c_i | w_c_f | 0 | w_c_o], f32
      hc_ref    : [1, N, 2*Fout]         output [H_t | C_t], f32
      h_scr     : [N, Fout] f32 scratch  carried hidden state
      c_scr     : [N, Fout] f32 scratch  carried cell state
    """
    t = pl.program_id(0)

    @pl.when(t == 0)
    def _():
        h_scr[...] = h0_ref[...]
        c_scr[...] = c0_ref[...]

    cdt = lhat2_ref.dtype                   # MXU operand dtype (bf16 or f32)
    L2 = lhat2_ref[...]                     # [N, N] (resident across steps)
    X = x_ref[0]                            # [N, Fin]   f32
    H = h_scr[...]                          # [N, Fout]  f32
    C = c_scr[...]                          # [N, Fout]  f32

    # ---- shared Chebyshev basis on Z = [X | H] (f32 taps, cdt MXU operands) ----
    Z = jnp.concatenate([X, H], axis=1)     # [N, Fin+Fout]
    taps = [Z]                              # T0 = Z
    if K > 1:
        # T1 = L_hat @ Z = 0.5 * (Lhat2 @ Z)   (single cheap scale)
        t1 = 0.5 * jnp.dot(L2, Z.astype(cdt), preferred_element_type=jnp.float32)
        taps.append(t1)
        tp2, tp1 = Z, t1
        for _ in range(2, K):
            # T_k = 2 L_hat T_{k-1} - T_{k-2} = Lhat2 @ T_{k-1} - T_{k-2}
            tk = jnp.dot(L2, tp1.astype(cdt),
                         preferred_element_type=jnp.float32) - tp2
            taps.append(tk)
            tp2, tp1 = tp1, tk

    # ---- one lane-wide gate matmul: [N, K*Cin] @ [K*Cin, 4*Fout] ----
    TB = jnp.concatenate(taps, axis=1).astype(cdt)
    pre = jnp.dot(TB, w_ref[...], preferred_element_type=jnp.float32)
    pre = pre + bias_ref[...]               # folded biases, broadcast over nodes

    # ---- split lane-stacked gates; LSTM elementwise math in f32 ----
    pre_i = pre[:, 0 * Fout:1 * Fout]
    pre_f = pre[:, 1 * Fout:2 * Fout]
    pre_c = pre[:, 2 * Fout:3 * Fout]
    pre_o = pre[:, 3 * Fout:4 * Fout]
    wc_i = wc_ref[:, 0 * Fout:1 * Fout]
    wc_f = wc_ref[:, 1 * Fout:2 * Fout]
    wc_o = wc_ref[:, 3 * Fout:4 * Fout]

    I = jax.nn.sigmoid(pre_i + wc_i * C)
    Fg = jax.nn.sigmoid(pre_f + wc_f * C)
    G = jnp.tanh(pre_c)
    C_new = Fg * C + I * G
    O = jax.nn.sigmoid(pre_o + wc_o * C_new)     # output gate sees the NEW cell state
    H_new = O * jnp.tanh(C_new)

    h_scr[...] = H_new
    c_scr[...] = C_new
    hc_ref[0] = jnp.concatenate([H_new, C_new], axis=1)   # lane-packed [H_t | C_t]


# ----------------------------------------------------------------------------
# Parameter packing (layout plumbing, plain JAX)
# ----------------------------------------------------------------------------
def pack_params(params, compute_dtype):
    wx, wh = params["wx"], params["wh"]          # [4,K,Fin,Fout], [4,K,Fout,Fout]
    bx, bh, bg, wc = params["bx"], params["bh"], params["bg"], params["wc"]
    G, K, Fin, Fout = wx.shape
    assert G == 4
    Cin = Fin + Fout
    # Combined weight acting on Z = [X | H]: [4, K, Cin, Fout]
    w_cat = jnp.concatenate([wx, wh], axis=2)
    # Lane-stack the 4 gates (i|f|c|o) and flatten taps onto the contraction dim:
    #   [K, Cin, 4*Fout] -> [K*Cin, 4*Fout]
    w_flat = jnp.transpose(w_cat, (1, 2, 0, 3)).reshape(K * Cin, 4 * Fout)
    # Fold all additive biases into one lane-stacked slab.
    bias = (bx + bh + bg).reshape(1, 4 * Fout).astype(jnp.float32)
    # Peephole weights in GATE order [w_c_i | w_c_f | 0 | w_c_o] -> [1, 4*Fout].
    wc_slab = jnp.concatenate(
        [wc[0:1], wc[1:2], jnp.zeros((1, Fout), wc.dtype), wc[2:3]], axis=0
    ).reshape(1, 4 * Fout).astype(jnp.float32)
    return w_flat.astype(compute_dtype), bias, wc_slab


def _vmem_limit_bytes():
    # 75% of per-core VMEM: ~48 MiB on v7x, ~96 MiB on v5e/v6e; None -> default.
    try:
        cap = getattr(pltpu.get_tpu_info(), "vmem_capacity_bytes", None)
        if cap:
            return int(cap) * 3 // 4
    except Exception:
        pass
    return None


# ----------------------------------------------------------------------------
# Wrappers
# ----------------------------------------------------------------------------
def gconv_lstm_forward(lhat, x_seq, h0, c0, params, compute_dtype=jnp.bfloat16):
    """T-step fused rollout.  x_seq: [T, N, Fin].  Returns (H_seq, C_seq)."""
    T, N, Fin = x_seq.shape
    K = params["wx"].shape[1]
    Fout = params["wx"].shape[-1]
    Cin = Fin + Fout

    w_flat, bias, wc_slab = pack_params(params, compute_dtype)
    lhat2 = (2.0 * lhat).astype(compute_dtype)          # pre-scaled Laplacian
    x_seq = x_seq.astype(jnp.float32)
    h0 = h0.astype(jnp.float32)
    c0 = c0.astype(jnp.float32)

    itemsize = jnp.dtype(compute_dtype).itemsize
    flops_per_step = (2 * (K - 1) * N * N * Cin            # Chebyshev recursion
                      + 2 * N * (K * Cin) * (4 * Fout)     # gate matmul
                      + 10 * N * Fout)                     # gating elementwise
    cost = pl.CostEstimate(
        flops=int(T * flops_per_step),
        transcendentals=int(T * 5 * N * Fout),
        bytes_accessed=int(N * N * itemsize + K * Cin * 4 * Fout * itemsize
                           + T * (N * Fin * 4 + N * 2 * Fout * 4)
                           + 2 * N * Fout * 4),
    )

    grid_spec = pltpu.PrefetchScalarGridSpec(
        num_scalar_prefetch=0,
        grid=(T,),
        in_specs=[
            pl.BlockSpec((N, N), lambda t: (0, 0)),                 # Lhat2 (resident)
            pl.BlockSpec((1, N, Fin), lambda t: (t, 0, 0)),         # X_t  (streamed)
            pl.BlockSpec((N, Fout), lambda t: (0, 0)),              # H0   (resident)
            pl.BlockSpec((N, Fout), lambda t: (0, 0)),              # C0   (resident)
            pl.BlockSpec((K * Cin, 4 * Fout), lambda t: (0, 0)),    # weights (resident)
            pl.BlockSpec((1, 4 * Fout), lambda t: (0, 0)),          # biases  (resident)
            pl.BlockSpec((1, 4 * Fout), lambda t: (0, 0)),          # peephole(resident)
        ],
        out_specs=pl.BlockSpec((1, N, 2 * Fout), lambda t: (t, 0, 0)),
        scratch_shapes=[pltpu.VMEM((N, Fout), jnp.float32),         # carried H
                        pltpu.VMEM((N, Fout), jnp.float32)],        # carried C
    )

    hc = pl.pallas_call(
        partial(_gconv_lstm_seq_kernel, K, Fout),
        out_shape=jax.ShapeDtypeStruct((T, N, 2 * Fout), jnp.float32),
        grid_spec=grid_spec,
        compiler_params=pltpu.CompilerParams(
            dimension_semantics=("arbitrary",),        # recurrent -> sequential
            vmem_limit_bytes=_vmem_limit_bytes(),
        ),
        cost_estimate=cost,
    )(lhat2, x_seq, h0, c0, w_flat, bias, wc_slab)

    return hc[:, :, :Fout], hc[:, :, Fout:]


def gconv_lstm_cell(lhat, x, h, c, params, compute_dtype=jnp.bfloat16):
    """Single-step cell (matches the PyTorch module's forward).  Returns (H, C)."""
    h_seq, c_seq = gconv_lstm_forward(lhat, x[None], h, c, params, compute_dtype)
    return h_seq[0], c_seq[0]


# ----------------------------------------------------------------------------
# Glue: dense scaled Laplacian (sym normalization, lambda_max = 2.0), plain JAX
# ----------------------------------------------------------------------------
def scaled_laplacian(edge_index, edge_weight, num_nodes, lambda_max=2.0):
    row, col = edge_index[0], edge_index[1]
    A = jnp.zeros((num_nodes, num_nodes), jnp.float32).at[row, col].add(edge_weight)
    deg = A.sum(axis=1)
    dinv = jnp.where(deg > 0, 1.0 / jnp.sqrt(deg), 0.0)
    L = jnp.eye(num_nodes, dtype=jnp.float32) - dinv[:, None] * A * dinv[None, :]
    return (2.0 / lambda_max) * L - jnp.eye(num_nodes, dtype=jnp.float32)


# ----------------------------------------------------------------------------
# Pure-JAX reference (mirrors the PyTorch module)
# ----------------------------------------------------------------------------
def _cheb_ref(lhat, Z, W, b):
    Tx0 = Z
    out = Tx0 @ W[0]
    if W.shape[0] > 1:
        Tx1 = lhat @ Z
        out = out + Tx1 @ W[1]
        for k in range(2, W.shape[0]):
            Tx2 = 2.0 * (lhat @ Tx1) - Tx0
            out = out + Tx2 @ W[k]
            Tx0, Tx1 = Tx1, Tx2
    return out + b[None, :]


def _ref_forward(lhat, x, h, c, p):
    wx, wh, bx, bh, wc, bg = p["wx"], p["wh"], p["bx"], p["bh"], p["wc"], p["bg"]
    I = jax.nn.sigmoid(_cheb_ref(lhat, x, wx[0], bx[0]) +
                       _cheb_ref(lhat, h, wh[0], bh[0]) + wc[0] * c + bg[0])
    F = jax.nn.sigmoid(_cheb_ref(lhat, x, wx[1], bx[1]) +
                       _cheb_ref(lhat, h, wh[1], bh[1]) + wc[1] * c + bg[1])
    T = jnp.tanh(_cheb_ref(lhat, x, wx[2], bx[2]) +
                 _cheb_ref(lhat, h, wh[2], bh[2]) + bg[2])
    c_new = F * c + I * T
    O = jax.nn.sigmoid(_cheb_ref(lhat, x, wx[3], bx[3]) +
                       _cheb_ref(lhat, h, wh[3], bh[3]) + wc[2] * c_new + bg[3])
    return O * jnp.tanh(c_new), c_new


def _ref_rollout(lhat, x_seq, h, c, p):
    hs, cs = [], []
    for t in range(x_seq.shape[0]):
        h, c = _ref_forward(lhat, x_seq[t], h, c, p)
        hs.append(h)
        cs.append(c)
    return jnp.stack(hs), jnp.stack(cs)


# ----------------------------------------------------------------------------
# Main
# ----------------------------------------------------------------------------
if __name__ == "__main__":
    N, Fin, Fout, K, T = 16, 4, 32, 3, 8   # nodes, in/out channels, Cheb order, steps

    key = jax.random.PRNGKey(0)
    k_x, k_wx, k_wh, k_wc = jax.random.split(key, 4)

    # ring graph, symmetric edges, unit weights
    src = jnp.arange(N, dtype=jnp.int32)
    dst = (src + 1) % N
    edge_index = jnp.stack([jnp.concatenate([src, dst]),
                            jnp.concatenate([dst, src])], axis=0)
    edge_weight = jnp.ones((edge_index.shape[1],), jnp.float32)

    X_seq = jax.random.normal(k_x, (T, N, Fin), jnp.float32)
    H0 = jnp.zeros((N, Fout), jnp.float32)   # _set_hidden_state default
    C0 = jnp.zeros((N, Fout), jnp.float32)   # _set_cell_state default

    def glorot(k, shape):
        fan_in, fan_out = shape[-2], shape[-1]
        limit = jnp.sqrt(6.0 / (fan_in + fan_out))
        return jax.random.uniform(k, shape, jnp.float32, -limit, limit)

    params = {
        "wx": glorot(k_wx, (4, K, Fin, Fout)),     # conv_x_{i,f,c,o} weights
        "wh": glorot(k_wh, (4, K, Fout, Fout)),    # conv_h_{i,f,c,o} weights
        "bx": jnp.zeros((4, Fout), jnp.float32),   # ChebConv biases init to zeros
        "bh": jnp.zeros((4, Fout), jnp.float32),
        "wc": jax.random.uniform(k_wc, (3, Fout), jnp.float32,
                                 -jnp.sqrt(6.0 / (1 + Fout)),
                                 jnp.sqrt(6.0 / (1 + Fout))),   # w_c_{i,f,o}
        "bg": jnp.zeros((4, Fout), jnp.float32),   # b_i, b_f, b_c, b_o (zeros)
    }

    lhat = scaled_laplacian(edge_index, edge_weight, N)
    h_ref_seq, c_ref_seq = _ref_rollout(lhat, X_seq, H0, C0, params)

    # Single-step cell (module forward semantics), f32 MXU path: tight check.
    h1, c1 = gconv_lstm_cell(lhat, X_seq[0], H0, C0, params,
                             compute_dtype=jnp.float32)
    jax.block_until_ready((h1, c1))
    assert jnp.allclose(h1, h_ref_seq[0], atol=2e-4, rtol=2e-4)
    assert jnp.allclose(c1, c_ref_seq[0], atol=2e-4, rtol=2e-4)

    # Fused T-step rollout, f32 MXU path.
    hs32, cs32 = gconv_lstm_forward(lhat, X_seq, H0, C0, params,
                                    compute_dtype=jnp.float32)
    jax.block_until_ready((hs32, cs32))
    assert jnp.allclose(hs32, h_ref_seq, atol=1e-3, rtol=1e-3)
    assert jnp.allclose(cs32, c_ref_seq, atol=1e-3, rtol=1e-3)

    # Fused T-step rollout, bf16 MXU operands (f32 accumulation / gating).
    hsbf, csbf = gconv_lstm_forward(lhat, X_seq, H0, C0, params,
                                    compute_dtype=jnp.bfloat16)
    jax.block_until_ready((hsbf, csbf))
    assert jnp.allclose(hsbf, h_ref_seq, atol=1.5e-1, rtol=1e-1)
    assert jnp.allclose(csbf, c_ref_seq, atol=1.5e-1, rtol=1e-1)

    print("KERNEL_OK")
</pallas_src>

<mosaic_0001>
module attributes {stable_mosaic.version = 11 : i64} {
  func.func @_gconv_lstm_seq_kernel(%arg0: i32, %arg1: memref<16x16xf32, #tpu.memory_space<vmem>>, %arg2: memref<1x16x4xf32, #tpu.memory_space<vmem>>, %arg3: memref<16x32xf32, #tpu.memory_space<vmem>>, %arg4: memref<16x32xf32, #tpu.memory_space<vmem>>, %arg5: memref<108x128xf32, #tpu.memory_space<vmem>>, %arg6: memref<1x128xf32, #tpu.memory_space<vmem>>, %arg7: memref<1x128xf32, #tpu.memory_space<vmem>>, %arg8: memref<1x16x64xf32, #tpu.memory_space<vmem>>, %arg9: memref<16x32xf32, #tpu.memory_space<vmem>>, %arg10: memref<16x32xf32, #tpu.memory_space<vmem>>) attributes {dimension_semantics = [#tpu.dimension_semantics<arbitrary>], iteration_bounds = array<i64: 1>, scalar_prefetch = 0 : i64, scratch_operands = 2 : i64, tpu.core_type = #tpu.core_type<tc>, window_params = [{pipeline_mode = #tpu.pipeline_mode<synchronous>, transform_indices = @transform_0, window_bounds = array<i64: 16, 16>}, {transform_indices = @transform_1, window_bounds = array<i64: 1, 16, 4>}, {pipeline_mode = #tpu.pipeline_mode<synchronous>, transform_indices = @transform_2, window_bounds = array<i64: 16, 32>}, {pipeline_mode = #tpu.pipeline_mode<synchronous>, transform_indices = @transform_3, window_bounds = array<i64: 16, 32>}, {pipeline_mode = #tpu.pipeline_mode<synchronous>, transform_indices = @transform_4, window_bounds = array<i64: 108, 128>}, {pipeline_mode = #tpu.pipeline_mode<synchronous>, transform_indices = @transform_5, window_bounds = array<i64: 1, 128>}, {pipeline_mode = #tpu.pipeline_mode<synchronous>, transform_indices = @transform_6, window_bounds = array<i64: 1, 128>}, {transform_indices = @transform_7, window_bounds = array<i64: 1, 16, 64>}]} {
    %c0_i32 = arith.constant 0 : i32
    %0 = arith.cmpi eq, %arg0, %c0_i32 : i32
    %1 = arith.extui %0 : i1 to i32
    %c0_i32_0 = arith.constant 0 : i32
    %2 = arith.cmpi ne, %1, %c0_i32_0 : i32
    scf.if %2 {
      %c0_30 = arith.constant 0 : index
      %c0_31 = arith.constant 0 : index
      %63 = vector.load %arg3[%c0_30, %c0_31] : memref<16x32xf32, #tpu.memory_space<vmem>>, vector<16x32xf32>
      %c0_32 = arith.constant 0 : index
      %c0_33 = arith.constant 0 : index
      %64 = vector.load %arg9[%c0_32, %c0_33] : memref<16x32xf32, #tpu.memory_space<vmem>>, vector<16x32xf32>
      tpu.vector_store %arg9[%c0_32, %c0_33], %63 {strides = array<i32>} : memref<16x32xf32, #tpu.memory_space<vmem>>, vector<16x32xf32>,
      %c0_34 = arith.constant 0 : index
      %c0_35 = arith.constant 0 : index
      %65 = vector.load %arg4[%c0_34, %c0_35] : memref<16x32xf32, #tpu.memory_space<vmem>>, vector<16x32xf32>
      %c0_36 = arith.constant 0 : index
      %c0_37 = arith.constant 0 : index
      %66 = vector.load %arg10[%c0_36, %c0_37] : memref<16x32xf32, #tpu.memory_space<vmem>>, vector<16x32xf32>
      tpu.vector_store %arg10[%c0_36, %c0_37], %65 {strides = array<i32>} : memref<16x32xf32, #tpu.memory_space<vmem>>, vector<16x32xf32>,
    } else {
    }
    %c0 = arith.constant 0 : index
    %c0_1 = arith.constant 0 : index
    %3 = vector.load %arg1[%c0, %c0_1] : memref<16x16xf32, #tpu.memory_space<vmem>>, vector<16x16xf32>
    %c0_2 = arith.constant 0 : index
    %c0_3 = arith.constant 0 : index
    %c0_4 = arith.constant 0 : index
    %4 = vector.load %arg2[%c0_2, %c0_3, %c0_4] : memref<1x16x4xf32, #tpu.memory_space<vmem>>, vector<1x16x4xf32>
    %5 = vector.shape_cast %4 : vector<1x16x4xf32> to vector<16x4xf32>
    %c0_5 = arith.constant 0 : index
    %c0_6 = arith.constant 0 : index
    %6 = vector.load %arg9[%c0_5, %c0_6] : memref<16x32xf32, #tpu.memory_space<vmem>>, vector<16x32xf32>
    %c0_7 = arith.constant 0 : index
    %c0_8 = arith.constant 0 : index
    %7 = vector.load %arg10[%c0_7, %c0_8] : memref<16x32xf32, #tpu.memory_space<vmem>>, vector<16x32xf32>
    %8 = tpu.concatenate %5, %6 in 1 : vector<16x4xf32>, vector<16x32xf32> -> vector<16x36xf32>
    %cst = arith.constant dense<0.000000e+00> : vector<16x36xf32>
    %9 = tpu.matmul %3, %8, %cst {dimension_numbers = #tpu.dot_dimension_numbers<[1], [0], [0], [1], [0, 0, 1, 1], [], []>} : vector<16x16xf32>, vector<16x36xf32>, vector<16x36xf32> -> vector<16x36xf32>
    %cst_9 = arith.constant 5.000000e-01 : f32
    %10 = vector.broadcast %cst_9 : f32 to vector<16x36xf32>
    %11 = arith.mulf %10, %9 : vector<16x36xf32>
    %cst_10 = arith.constant dense<0.000000e+00> : vector<16x36xf32>
    %12 = tpu.matmul %3, %11, %cst_10 {dimension_numbers = #tpu.dot_dimension_numbers<[1], [0], [0], [1], [0, 0, 1, 1], [], []>} : vector<16x16xf32>, vector<16x36xf32>, vector<16x36xf32> -> vector<16x36xf32>
    %13 = arith.subf %12, %8 : vector<16x36xf32>
    %14 = tpu.concatenate %8, %11, %13 in 1 : vector<16x36xf32>, vector<16x36xf32>, vector<16x36xf32> -> vector<16x108xf32>
    %c0_11 = arith.constant 0 : index
    %c0_12 = arith.constant 0 : index
    %15 = vector.load %arg5[%c0_11, %c0_12] : memref<108x128xf32, #tpu.memory_space<vmem>>, vector<108x128xf32>
    %cst_13 = arith.constant dense<0.000000e+00> : vector<16x128xf32>
    %16 = tpu.matmul %14, %15, %cst_13 {dimension_numbers = #tpu.dot_dimension_numbers<[1], [0], [0], [1], [0, 0, 1, 1], [], []>} : vector<16x108xf32>, vector<108x128xf32>, vector<16x128xf32> -> vector<16x128xf32>
    %c0_14 = arith.constant 0 : index
    %c0_15 = arith.constant 0 : index
    %17 = vector.load %arg6[%c0_14, %c0_15] : memref<1x128xf32, #tpu.memory_space<vmem>>, vector<1x128xf32>
    %18 = vector.broadcast %17 : vector<1x128xf32> to vector<16x128xf32>
    %19 = arith.addf %16, %18 : vector<16x128xf32>
    %20 = vector.extract_strided_slice %19 {offsets = [0, 0], sizes = [16, 32], strides = [1, 1]} : vector<16x128xf32> to vector<16x32xf32>
    %21 = vector.extract_strided_slice %19 {offsets = [0, 32], sizes = [16, 32], strides = [1, 1]} : vector<16x128xf32> to vector<16x32xf32>
    %22 = vector.extract_strided_slice %19 {offsets = [0, 64], sizes = [16, 32], strides = [1, 1]} : vector<16x128xf32> to vector<16x32xf32>
    %23 = vector.extract_strided_slice %19 {offsets = [0, 96], sizes = [16, 32], strides = [1, 1]} : vector<16x128xf32> to vector<16x32xf32>
    %c0_16 = arith.constant 0 : index
    %c0_17 = arith.constant 0 : index
    %24 = vector.load %arg7[%c0_16, %c0_17] : memref<1x128xf32, #tpu.memory_space<vmem>>, vector<1x32xf32>
    %c0_18 = arith.constant 0 : index
    %c32 = arith.constant 32 : index
    %25 = vector.load %arg7[%c0_18, %c32] : memref<1x128xf32, #tpu.memory_space<vmem>>, vector<1x32xf32>
    %c0_19 = arith.constant 0 : index
    %c96 = arith.constant 96 : index
    %26 = vector.load %arg7[%c0_19, %c96] : memref<1x128xf32, #tpu.memory_space<vmem>>, vector<1x32xf32>
    %27 = vector.broadcast %24 : vector<1x32xf32> to vector<16x32xf32>
    %28 = arith.mulf %27, %7 : vector<16x32xf32>
    %29 = arith.addf %20, %28 : vector<16x32xf32>
    %30 = arith.negf %29 : vector<16x32xf32>
    %31 = math.exp %30 : vector<16x32xf32>
    %cst_20 = arith.constant 1.000000e+00 : f32
    %32 = vector.broadcast %cst_20 : f32 to vector<16x32xf32>
    %33 = arith.addf %32, %31 : vector<16x32xf32>
    %34 = arith.divf %32, %33 : vector<16x32xf32>
    %35 = vector.broadcast %25 : vector<1x32xf32> to vector<16x32xf32>
    %36 = arith.mulf %35, %7 : vector<16x32xf32>
    %37 = arith.addf %21, %36 : vector<16x32xf32>
    %38 = arith.negf %37 : vector<16x32xf32>
    %39 = math.exp %38 : vector<16x32xf32>
    %cst_21 = arith.constant 1.000000e+00 : f32
    %40 = vector.broadcast %cst_21 : f32 to vector<16x32xf32>
    %41 = arith.addf %40, %39 : vector<16x32xf32>
    %42 = arith.divf %40, %41 : vector<16x32xf32>
    %43 = math.tanh %22 : vector<16x32xf32>
    %44 = arith.mulf %42, %7 : vector<16x32xf32>
    %45 = arith.mulf %34, %43 : vector<16x32xf32>
    %46 = arith.addf %44, %45 : vector<16x32xf32>
    %47 = vector.broadcast %26 : vector<1x32xf32> to vector<16x32xf32>
    %48 = arith.mulf %47, %46 : vector<16x32xf32>
    %49 = arith.addf %23, %48 : vector<16x32xf32>
    %50 = arith.negf %49 : vector<16x32xf32>
    %51 = math.exp %50 : vector<16x32xf32>
    %cst_22 = arith.constant 1.000000e+00 : f32
    %52 = vector.broadcast %cst_22 : f32 to vector<16x32xf32>
    %53 = arith.addf %52, %51 : vector<16x32xf32>
    %54 = arith.divf %52, %53 : vector<16x32xf32>
    %55 = math.tanh %46 : vector<16x32xf32>
    %56 = arith.mulf %54, %55 : vector<16x32xf32>
    %c0_23 = arith.constant 0 : index
    %c0_24 = arith.constant 0 : index
    %57 = vector.load %arg9[%c0_23, %c0_24] : memref<16x32xf32, #tpu.memory_space<vmem>>, vector<16x32xf32>
    tpu.vector_store %arg9[%c0_23, %c0_24], %56 {strides = array<i32>} : memref<16x32xf32, #tpu.memory_space<vmem>>, vector<16x32xf32>,
    %c0_25 = arith.constant 0 : index
    %c0_26 = arith.constant 0 : index
    %58 = vector.load %arg10[%c0_25, %c0_26] : memref<16x32xf32, #tpu.memory_space<vmem>>, vector<16x32xf32>
    tpu.vector_store %arg10[%c0_25, %c0_26], %46 {strides = array<i32>} : memref<16x32xf32, #tpu.memory_space<vmem>>, vector<16x32xf32>,
    %59 = tpu.concatenate %56, %46 in 1 : vector<16x32xf32>, vector<16x32xf32> -> vector<16x64xf32>
    %c0_27 = arith.constant 0 : index
    %c0_28 = arith.constant 0 : index
    %c0_29 = arith.constant 0 : index
    %60 = vector.load %arg8[%c0_27, %c0_28, %c0_29] : memref<1x16x64xf32, #tpu.memory_space<vmem>>, vector<1x16x64xf32>
    %61 = vector.shape_cast %60 : vector<1x16x64xf32> to vector<16x64xf32>
    %62 = vector.shape_cast %59 : vector<16x64xf32> to vector<1x16x64xf32>
    tpu.vector_store %arg8[%c0_27, %c0_28, %c0_29], %62 {strides = array<i32>} : memref<1x16x64xf32, #tpu.memory_space<vmem>>, vector<1x16x64xf32>,
    return
  }
  func.func @transform_0(%arg0: i32) -> (i32, i32) {
    %c0_i32 = arith.constant 0 : i32
    %c0_i32_0 = arith.constant 0 : i32
    %c0_i32_1 = arith.constant 0 : i32
    return %c0_i32, %c0_i32_0 : i32, i32
  }
  func.func @transform_1(%arg0: i32) -> (i32, i32, i32) {
    %c0_i32 = arith.constant 0 : i32
    %c0_i32_0 = arith.constant 0 : i32
    %c0_i32_1 = arith.constant 0 : i32
    return %arg0, %c0_i32, %c0_i32_0 : i32, i32, i32
  }
  func.func @transform_2(%arg0: i32) -> (i32, i32) {
    %c0_i32 = arith.constant 0 : i32
    %c0_i32_0 = arith.constant 0 : i32
    %c0_i32_1 = arith.constant 0 : i32
    return %c0_i32, %c0_i32_0 : i32, i32
  }
  func.func @transform_3(%arg0: i32) -> (i32, i32) {
    %c0_i32 = arith.constant 0 : i32
    %c0_i32_0 = arith.constant 0 : i32
    %c0_i32_1 = arith.constant 0 : i32
    return %c0_i32, %c0_i32_0 : i32, i32
  }
  func.func @transform_4(%arg0: i32) -> (i32, i32) {
    %c0_i32 = arith.constant 0 : i32
    %c0_i32_0 = arith.constant 0 : i32
    %c0_i32_1 = arith.constant 0 : i32
    return %c0_i32, %c0_i32_0 : i32, i32
  }
  func.func @transform_5(%arg0: i32) -> (i32, i32) {
    %c0_i32 = arith.constant 0 : i32
    %c0_i32_0 = arith.constant 0 : i32
    %c0_i32_1 = arith.constant 0 : i32
    return %c0_i32, %c0_i32_0 : i32, i32
  }
  func.func @transform_6(%arg0: i32) -> (i32, i32) {
    %c0_i32 = arith.constant 0 : i32
    %c0_i32_0 = arith.constant 0 : i32
    %c0_i32_1 = arith.constant 0 : i32
    return %c0_i32, %c0_i32_0 : i32, i32
  }
  func.func @transform_7(%arg0: i32) -> (i32, i32, i32) {
    %c0_i32 = arith.constant 0 : i32
    %c0_i32_0 = arith.constant 0 : i32
    %c0_i32_1 = arith.constant 0 : i32
    return %arg0, %c0_i32, %c0_i32_0 : i32, i32, i32
  }
}

</mosaic_0001>

<llo_original>
// kernel: tpu_custom_call.1
$region0: #{tpu_custom_call.1}
  #allocation0 [shape = 'u32[]', space=smem, size = 0x4, offset = 0x4, fixed_abs, tag = 'smem constant byte address 0x4 - core index']
  #allocation1 [shape = 'u32[72,128]{1,0:T(1,128)}', space=vmem, size = 0x9000, scoped, tag = 'internal scratch']
  #allocation2 [shape = 'f32[16,32]{1,0:T(8,128)}', space=vmem, size = 0x2000, scoped, tag = 'scratch operand']
  #allocation3 [shape = 'f32[16,32]{1,0:T(8,128)}', space=vmem, size = 0x2000, scoped, tag = 'scratch operand']
  %s0 = inlined_call_operand.vmem [shape: f32[16,16], index: 0, kind: input, shape index: {}]
  %s1 = inlined_call_operand.vmem [shape: f32[1,16,4], index: 1, kind: input, shape index: {}]
  %s2 = inlined_call_operand.hbm [shape: f32[16,32], index: 2, kind: input, shape index: {}]
  %s3 = inlined_call_operand.hbm [shape: f32[16,32], index: 3, kind: input, shape index: {}]
  %s4 = inlined_call_operand.hbm [shape: f32[108,128], index: 4, kind: input, shape index: {}]
  %s5 = inlined_call_operand.vmem [shape: f32[1,128], index: 5, kind: input, shape index: {}]
  %s6 = inlined_call_operand.vmem [shape: f32[1,128], index: 6, kind: input, shape index: {}]
  %s7 = inlined_call_operand.hbm [shape: f32[1,16,64], index: 7, kind: output, shape index: {}]
  %s8 = sld [smem:[#allocation0]]
  $region54: #{tpu_custom_call.1} parent=0
    _
  %s10 = ssub.s32 1, %s8
  %s11 = scalar_select 0, %s10, %s8
  $region1: #{tpu_custom_call.1} parent=0
    #allocation4 [shape = 'u8[8192]{0}', space=vmem, size = 0x2000, scoped, tag = 'input window, operand 2, single buffered']
    #allocation5 [shape = 's32[1]{0}', space=sflag, size = 0x4, scoped, tag = 'scoped memory for tpu_custom_call.1']
    #allocation6 [shape = 's32[1]{0}', space=sflag, size = 0x4, scoped, tag = 'scoped memory for tpu_custom_call.1']
    #allocation7 [shape = 'u8[8192]{0}', space=vmem, size = 0x2000, scoped, tag = 'input window, operand 3, single buffered']
    #allocation8 [shape = 's32[1]{0}', space=sflag, size = 0x4, scoped, tag = 'scoped memory for tpu_custom_call.1']
    #allocation9 [shape = 'u8[57344]{0}', space=vmem, size = 0xe000, scoped, tag = 'input window, operand 4, single buffered']
    #allocation10 [shape = 'u8[8192]{0}', space=vmem, size = 0x2000, scoped, tag = 'output window, operand 0, single buffered']
    %12 = vsyncpa [#allocation5], 0
    %13 = vsyncpa [#allocation8], 0
    %14 = vsyncpa [#allocation6], 0
    // Predicated region
    $region2: #{tpu_custom_call.1} parent=1 // pred_check
      _
    $region3: #{tpu_custom_call.1} parent=1 // pred_check_branch
      %16 = sbr.rel (0) target = $region5
    $region4: #{tpu_custom_call.1} parent=1 // pred_region
      _
    $region5: #{tpu_custom_call.1} parent=1 // pred_fallthru
      _
    // Predicated region
    $region6: #{tpu_custom_call.1} parent=1 // pred_check
      _
    $region7: #{tpu_custom_call.1} parent=1 // pred_check_branch
      %18 = sbr.rel (0) target = $region9
    $region8: #{tpu_custom_call.1} parent=1 // pred_region
      _
    $region9: #{tpu_custom_call.1} parent=1 // pred_fallthru
      _
    // Predicated region
    $region10: #{tpu_custom_call.1} parent=1 // pred_check
      _
    $region11: #{tpu_custom_call.1} parent=1 // pred_check_branch
      %20 = sbr.rel (0) target = $region13
    $region12: #{tpu_custom_call.1} parent=1 // pred_region
      %22 = vsyncadd [#allocation5], 0
      %s23 = sshll.u32 %s2, 4
      %s24 = int_to_ptr.hbm [resolvable:$true] %s23
      %s25 = sshll.u32 [#allocation4], 4
      %s26 = int_to_ptr.vmem [resolvable:$true] %s25
      %31 = dma.hbm_to_vmem [thread:$0]  %s24, 256, %s26, [#allocation5], 128, 128, 8
    $region13: #{tpu_custom_call.1} parent=1 // pred_fallthru
      _
    // Predicated region
    $region14: #{tpu_custom_call.1} parent=1 // pred_check
      _
    $region15: #{tpu_custom_call.1} parent=1 // pred_check_branch
      %33 = sbr.rel (0) target = $region17
    $region16: #{tpu_custom_call.1} parent=1 // pred_region
      %35 = vsyncadd [#allocation8], 0
      %s36 = sshll.u32 %s3, 4
      %s37 = int_to_ptr.hbm [resolvable:$true] %s36
      %s38 = sshll.u32 [#allocation7], 4
      %s39 = int_to_ptr.vmem [resolvable:$true] %s38
      %44 = dma.hbm_to_vmem [thread:$0]  %s37, 256, %s39, [#allocation8], 128, 128, 8
    $region17: #{tpu_custom_call.1} parent=1 // pred_fallthru
      _
    // Predicated region
    $region18: #{tpu_custom_call.1} parent=1 // pred_check
      _
    $region19: #{tpu_custom_call.1} parent=1 // pred_check_branch
      %46 = sbr.rel (0) target = $region21
    $region20: #{tpu_custom_call.1} parent=1 // pred_region
      %48 = vsyncadd [#allocation8], 0
      %s49 = sshll.u32 %s4, 4
      %s50 = int_to_ptr.hbm [resolvable:$true] %s49
      %s51 = sshll.u32 [#allocation9], 4
      %s52 = int_to_ptr.vmem [resolvable:$true] %s51
      %57 = dma.hbm_to_vmem [thread:$0]  %s50, 1792, %s52, [#allocation8], 128, 128, 8
    $region21: #{tpu_custom_call.1} parent=1 // pred_fallthru
      _
    // Predicated region
    $region22: #{tpu_custom_call.1} parent=1 // pred_check
      _
    $region23: #{tpu_custom_call.1} parent=1 // pred_check_branch
      %59 = sbr.rel (0) target = $region25
    $region24: #{tpu_custom_call.1} parent=1 // pred_region
      _
    $region25: #{tpu_custom_call.1} parent=1 // pred_fallthru
      _
    // Predicated region
    $region26: #{tpu_custom_call.1} parent=1 // pred_check
      _
    $region27: #{tpu_custom_call.1} parent=1 // pred_check_branch
      %61 = sbr.rel (0) target = $region29
    $region28: #{tpu_custom_call.1} parent=1 // pred_region
      _
    $region29: #{tpu_custom_call.1} parent=1 // pred_fallthru
      _
    // Predicated region
    $region30: #{tpu_custom_call.1} parent=1 // pred_check
      _
    $region31: #{tpu_custom_call.1} parent=1 // pred_check_branch
      %63 = sbr.rel (0) target = $region33
    $region32: #{tpu_custom_call.1} parent=1 // pred_region
      %65 = dma.done [#allocation5], 256
    $region33: #{tpu_custom_call.1} parent=1 // pred_fallthru
      _
    // Predicated region
    $region34: #{tpu_custom_call.1} parent=1 // pred_check
      _
    $region35: #{tpu_custom_call.1} parent=1 // pred_check_branch
      %67 = sbr.rel (0) target = $region37
    $region36: #{tpu_custom_call.1} parent=1 // pred_region
      %69 = dma.done [#allocation8], 256
    $region37: #{tpu_custom_call.1} parent=1 // pred_fallthru
      _
    // Predicated region
    $region38: #{tpu_custom_call.1} parent=1 // pred_check
      _
    $region39: #{tpu_custom_call.1} parent=1 // pred_check_branch
      %71 = sbr.rel (0) target = $region41
    $region40: #{tpu_custom_call.1} parent=1 // pred_region
      %73 = dma.done [#allocation8], 1792
    $region41: #{tpu_custom_call.1} parent=1 // pred_fallthru
      _
    %p74 = scmp.eq.s32.totalorder 0, 0
    // Predicated region
    $region42: #{tpu_custom_call.1} parent=1 // pred_check
      %p75 = pneg %p74
    $region43: #{tpu_custom_call.1} parent=1 // pred_check_branch
      %77 = sbr.rel (%p75) target = $region45
    $region44: #{tpu_custom_call.1} parent=1 // pred_region
      %v78 = vld [vmem:[#allocation4] sm:$0xff]
      %v79 = vld [vmem:[#allocation4 + $0x8] sm:$0xff]
      %vm80 = vcmask 261120
      %81 = vst.msk [vmem:[#allocation2] sm:$0xff] %vm80, %v78
      %82 = vst.msk [vmem:[#allocation2 + $0x8] sm:$0xff] %vm80, %v79
      %v83 = vld [vmem:[#allocation7] sm:$0xff]
      %v84 = vld [vmem:[#allocation7 + $0x8] sm:$0xff]
      %85 = vst.msk [vmem:[#allocation3] sm:$0xff] %vm80, %v83
      %86 = vst.msk [vmem:[#allocation3 + $0x8] sm:$0xff] %vm80, %v84
    $region45: #{tpu_custom_call.1} parent=1 // pred_fallthru
      _
    %v87 = vld [vmem:[%s0] sm:$0xff]
    %v88 = vld [vmem:[%s0 + $0x8] sm:$0xff]
    %v89 = vld [vmem:[%s1] sm:$0xff]
    %v90 = vld [vmem:[%s1 + $0x8] sm:$0xff]
    %v91 = vld [vmem:[#allocation2] sm:$0xff]
    %v92 = vld [vmem:[#allocation2 + $0x8] sm:$0xff]
    %v93 = vld [vmem:[#allocation3] sm:$0xff]
    %v94 = vld [vmem:[#allocation3 + $0x8] sm:$0xff]
    %97 = vrot.lane.b32.xlu0 %v91, 4
    %v98 = vpop.permute.xlu0 %97
    %99 = vrot.lane.b32.xlu0 %v92, 4
    %v100 = vpop.permute.xlu0 %99
    %vm103 = vcmask 31744
    %v104 = vsel %vm103, %v89, %v98
    %v105 = vsel %vm103, %v90, %v100
    %vm106 = vcmask 130048
    %v108 = vsel %vm106, %v87, 0
    %v111 = vsel %vm106, %v88, 0
    %113 = vmatpush.msra.mxu0 0.0
    %114 = vmatpush.msra.mxu0 0.0
    %115 = vmatpush.msra.mxu0 0.0
    %116 = vmatpush.msra.mxu0 0.0
    %117 = vmatpush.msra.mxu0 0.0
    %118 = vmatpush.msra.mxu0 0.0
    %119 = vmatpush.msra.mxu0 0.0
    %120 = vmatpush.msra.mxu0 0.0
    %121 = vmatpush.msra.mxu0 0.0
    %122 = vmatpush.msra.mxu0 0.0
    %123 = vmatpush.msra.mxu0 0.0
    %124 = vmatpush.msra.mxu0 0.0
    %125 = vmatpush.msra.mxu0 0.0
    %126 = vmatpush.msra.mxu0 0.0
    %127 = vmatpush.msra.mxu0 %v105
    %128 = vmatpush.msra.mxu0 %v104
    %129 = vmatmul.f32.gmra.mxu0 %v108
    %v130 = vpop.f32.mrf.mxu0
    %v131 = vadd.f32 0.0, %v130
    %132 = vmatmul.f32.gmra.mxu0 %v111
    %v133 = vpop.f32.mrf.mxu0
    %v134 = vadd.f32 0.0, %v133
    %135 = vdwg.mxu0
    %v136 = vmul.f32 %v131, 0.5
    %v137 = vmul.f32 %v134, 0.5
    %138 = vmatpush.msra.mxu0 0.0
    %139 = vmatpush.msra.mxu0 0.0
    %140 = vmatpush.msra.mxu0 0.0
    %141 = vmatpush.msra.mxu0 0.0
    %142 = vmatpush.msra.mxu0 0.0
    %143 = vmatpush.msra.mxu0 0.0
    %144 = vmatpush.msra.mxu0 0.0
    %145 = vmatpush.msra.mxu0 0.0
    %146 = vmatpush.msra.mxu0 0.0
    %147 = vmatpush.msra.mxu0 0.0
    %148 = vmatpush.msra.mxu0 0.0
    %149 = vmatpush.msra.mxu0 0.0
    %150 = vmatpush.msra.mxu0 0.0
    %151 = vmatpush.msra.mxu0 0.0
    %152 = vmatpush.msra.mxu0 %v137
    %153 = vmatpush.msra.mxu0 %v136
    %154 = vmatmul.f32.gmra.mxu0 %v108
    %v155 = vpop.f32.mrf.mxu0
    %v156 = vadd.f32 0.0, %v155
    %157 = vmatmul.f32.gmra.mxu0 %v111
    %v158 = vpop.f32.mrf.mxu0
    %v159 = vadd.f32 0.0, %v158
    %160 = vdwg.mxu0
    %v161 = vsub.f32 %v156, %v104
    %v162 = vsub.f32 %v159, %v105
    %165 = vrot.lane.b32.xlu0 %v136, 36
    %v166 = vpop.permute.xlu0 %165
    %167 = vrot.lane.b32.xlu0 %v137, 36
    %v168 = vpop.permute.xlu0 %167
    %173 = vrot.lane.b32.xlu0 %v161, 72
    %v174 = vpop.permute.xlu0 %173
    %175 = vrot.lane.b32.xlu0 %v162, 72
    %v176 = vpop.permute.xlu0 %175
    %vm179 = vcmask 293888
    %v180 = vsel %vm179, %v104, %v166
    %v181 = vsel %vm179, %v105, %v168
    %vm182 = vcmask 588800
    %v183 = vsel %vm182, %v180, %v174
    %v184 = vsel %vm182, %v181, %v176
    %v185 = vld [vmem:[#allocation9] sm:$0xff]
    %v186 = vld [vmem:[#allocation9 + $0x8] sm:$0xff]
    %v187 = vld [vmem:[#allocation9 + $0x10] sm:$0xff]
    %v188 = vld [vmem:[#allocation9 + $0x18] sm:$0xff]
    %v189 = vld [vmem:[#allocation9 + $0x20] sm:$0xff]
    %v190 = vld [vmem:[#allocation9 + $0x28] sm:$0xff]
    %v191 = vld [vmem:[#allocation9 + $0x30] sm:$0xff]
    %v192 = vld [vmem:[#allocation9 + $0x38] sm:$0xff]
    %v193 = vld [vmem:[#allocation9 + $0x40] sm:$0xff]
    %v194 = vld [vmem:[#allocation9 + $0x48] sm:$0xff]
    %v195 = vld [vmem:[#allocation9 + $0x50] sm:$0xff]
    %v196 = vld [vmem:[#allocation9 + $0x58] sm:$0xff]
    %v197 = vld [vmem:[#allocation9 + $0x60] sm:$0xff]
    %v198 = vld [vmem:[#allocation9 + $0x68] sm:$0xf]
    %v199 = vld [vmem:[%s5] sm:$0x1]
    %v201 = vperm.slane %v199, 0
    %vm203 = vcmask 883712
    %v205 = vsel %vm203, %v183, 0
    %v208 = vsel %vm203, %v184, 0
    %vm210 = vcmask 1043456
    %v212 = vsel %vm210, %v198, 0
    %214 = vmatpush.msra.mxu0 0.0
    %215 = vmatpush.msra.mxu0 0.0
    %216 = vmatpush.msra.mxu0 %v212
    %217 = vmatpush.msra.mxu0 %v197
    %218 = vmatpush.msra.mxu0 %v196
    %219 = vmatpush.msra.mxu0 %v195
    %220 = vmatpush.msra.mxu0 %v194
    %221 = vmatpush.msra.mxu0 %v193
    %222 = vmatpush.msra.mxu0 %v192
    %223 = vmatpush.msra.mxu0 %v191
    %224 = vmatpush.msra.mxu0 %v190
    %225 = vmatpush.msra.mxu0 %v189
    %226 = vmatpush.msra.mxu0 %v188
    %227 = vmatpush.msra.mxu0 %v187
    %228 = vmatpush.msra.mxu0 %v186
    %229 = vmatpush.msra.mxu0 %v185
    %230 = vmatmul.f32.gmra.mxu0 %v205
    %v231 = vpop.f32.mrf.mxu0
    %v232 = vadd.f32 %v201, %v231
    %233 = vmatmul.f32.gmra.mxu0 %v208
    %v234 = vpop.f32.mrf.mxu0
    %v235 = vadd.f32 %v201, %v234
    %236 = vdwg.mxu0
    %v237 = vld [vmem:[%s6] sm:$0x1]
    %v239 = vperm.slane %v237, 0
    %v241 = vmul.f32 %v239, %v93
    %v242 = vmul.f32 %v239, %v94
    %v243 = vadd.f32 %v232, %v241
    %v244 = vadd.f32 %v235, %v242
    %v245 = vxor.u32 %v243, 2147483648
    %v246 = vxor.u32 %v244, 2147483648
    %v247 = vmul.f32 %v245, 1.442695
    %v248 = vpow.pop %v247
    %v249 = vmul.f32 %v246, 1.442695
    %v250 = vpow.pop %v249
    %v251 = vadd.f32 %v248, 1.0
    %v252 = vadd.f32 %v250, 1.0
    %v253 = vrcp.pop %v251
    %v254 = vmul.f32 %v251, %v253
    %v255 = vsub.f32 1.0, %v254
    %v256 = vmul.f32 %v253, %v255
    %v257 = vadd.f32 %v253, %v256
    %vm258 = vweird.f32 %v251
    %vm259 = vweird.f32 %v253
    %vm260 = vmor %vm258, %vm259
    %v261 = vsel %vm260, %v253, %v257
    %v262 = vand.u32 2147483647, %v251
    %vm263 = vcmp.eq.f32.partialorder %v262, 8.507059e+37
    %v264 = vand.u32 %v251, 2147483648
    %v265 = vor.u32 1.1754944e-38, %v264
    %v266 = vsel %vm263, %v265, %v261
    %v267 = vmul.f32 1.0, %v266
    %v268 = vrcp.pop %v252
    %v269 = vmul.f32 %v252, %v268
    %v270 = vsub.f32 1.0, %v269
    %v271 = vmul.f32 %v268, %v270
    %v272 = vadd.f32 %v268, %v271
    %vm273 = vweird.f32 %v252
    %vm274 = vweird.f32 %v268
    %vm275 = vmor %vm273, %vm274
    %v276 = vsel %vm275, %v268, %v272
    %v277 = vand.u32 2147483647, %v252
    %vm278 = vcmp.eq.f32.partialorder %v277, 8.507059e+37
    %v279 = vand.u32 %v252, 2147483648
    %v280 = vor.u32 1.1754944e-38, %v279
    %v281 = vsel %vm278, %v280, %v276
    %v282 = vmul.f32 1.0, %v281
    %285 = vrot.lane.b32.xlu0 %v93, 32
    %v286 = vpop.permute.xlu0 %285
    %287 = vrot.lane.b32.xlu0 %v94, 32
    %v288 = vpop.permute.xlu0 %287
    %v291 = vmul.f32 %v239, %v286
    %v292 = vmul.f32 %v239, %v288
    %v293 = vadd.f32 %v232, %v291
    %v294 = vadd.f32 %v235, %v292
    %v295 = vxor.u32 %v293, 2147483648
    %v296 = vxor.u32 %v294, 2147483648
    %v297 = vmul.f32 %v295, 1.442695
    %v298 = vpow.pop %v297
    %v299 = vmul.f32 %v296, 1.442695
    %v300 = vpow.pop %v299
    %v301 = vadd.f32 %v298, 1.0
    %v302 = vadd.f32 %v300, 1.0
    %v303 = vrcp.pop %v301
    %v304 = vmul.f32 %v301, %v303
    %v305 = vsub.f32 1.0, %v304
    %v306 = vmul.f32 %v303, %v305
    %v307 = vadd.f32 %v303, %v306
    %vm308 = vweird.f32 %v301
    %vm309 = vweird.f32 %v303
    %vm310 = vmor %vm308, %vm309
    %v311 = vsel %vm310, %v303, %v307
    %v312 = vand.u32 2147483647, %v301
    %vm313 = vcmp.eq.f32.partialorder %v312, 8.507059e+37
    %v314 = vand.u32 %v301, 2147483648
    %v315 = vor.u32 1.1754944e-38, %v314
    %v316 = vsel %vm313, %v315, %v311
    %v317 = vmul.f32 1.0, %v316
    %v318 = vrcp.pop %v302
    %v319 = vmul.f32 %v302, %v318
    %v320 = vsub.f32 1.0, %v319
    %v321 = vmul.f32 %v318, %v320
    %v322 = vadd.f32 %v318, %v321
    %vm323 = vweird.f32 %v302
    %vm324 = vweird.f32 %v318
    %vm325 = vmor %vm323, %vm324
    %v326 = vsel %vm325, %v318, %v322
    %v327 = vand.u32 2147483647, %v302
    %vm328 = vcmp.eq.f32.partialorder %v327, 8.507059e+37
    %v329 = vand.u32 %v302, 2147483648
    %v330 = vor.u32 1.1754944e-38, %v329
    %v331 = vsel %vm328, %v330, %v326
    %v332 = vmul.f32 1.0, %v331
    %v333 = vtanh.pop %v232
    %v334 = vtanh.pop %v235
    %v335 = vmul.f32 %v317, %v286
    %v336 = vmul.f32 %v332, %v288
    %339 = vrot.lane.b32.xlu0 %v333, 64
    %v340 = vpop.permute.xlu0 %339
    %341 = vrot.lane.b32.xlu0 %v334, 64
    %v342 = vpop.permute.xlu0 %341
    %v345 = vmul.f32 %v267, %v340
    %v346 = vmul.f32 %v282, %v342
    %349 = vrot.lane.b32.xlu0 %v345, 32
    %v350 = vpop.permute.xlu0 %349
    %351 = vrot.lane.b32.xlu0 %v346, 32
    %v352 = vpop.permute.xlu0 %351
    %v355 = vadd.f32 %v335, %v350
    %v356 = vadd.f32 %v336, %v352
    %359 = vrot.lane.b32.xlu0 %v355, 64
    %v360 = vpop.permute.xlu0 %359
    %361 = vrot.lane.b32.xlu0 %v356, 64
    %v362 = vpop.permute.xlu0 %361
    %v365 = vmul.f32 %v239, %v360
    %v366 = vmul.f32 %v239, %v362
    %v367 = vadd.f32 %v232, %v365
    %v368 = vadd.f32 %v235, %v366
    %v369 = vxor.u32 %v367, 2147483648
    %v370 = vxor.u32 %v368, 2147483648
    %v371 = vmul.f32 %v369, 1.442695
    %v372 = vpow.pop %v371
    %v373 = vmul.f32 %v370, 1.442695
    %v374 = vpow.pop %v373
    %v375 = vadd.f32 %v372, 1.0
    %v376 = vadd.f32 %v374, 1.0
    %v377 = vrcp.pop %v375
    %v378 = vmul.f32 %v375, %v377
    %v379 = vsub.f32 1.0, %v378
    %v380 = vmul.f32 %v377, %v379
    %v381 = vadd.f32 %v377, %v380
    %vm382 = vweird.f32 %v375
    %vm383 = vweird.f32 %v377
    %vm384 = vmor %vm382, %vm383
    %v385 = vsel %vm384, %v377, %v381
    %v386 = vand.u32 2147483647, %v375
    %vm387 = vcmp.eq.f32.partialorder %v386, 8.507059e+37
    %v388 = vand.u32 %v375, 2147483648
    %v389 = vor.u32 1.1754944e-38, %v388
    %v390 = vsel %vm387, %v389, %v385
    %v391 = vmul.f32 1.0, %v390
    %v392 = vrcp.pop %v376
    %v393 = vmul.f32 %v376, %v392
    %v394 = vsub.f32 1.0, %v393
    %v395 = vmul.f32 %v392, %v394
    %v396 = vadd.f32 %v392, %v395
    %vm397 = vweird.f32 %v376
    %vm398 = vweird.f32 %v392
    %vm399 = vmor %vm397, %vm398
    %v400 = vsel %vm399, %v392, %v396
    %v401 = vand.u32 2147483647, %v376
    %vm402 = vcmp.eq.f32.partialorder %v401, 8.507059e+37
    %v403 = vand.u32 %v376, 2147483648
    %v404 = vor.u32 1.1754944e-38, %v403
    %v405 = vsel %vm402, %v404, %v400
    %v406 = vmul.f32 1.0, %v405
    %v407 = vtanh.pop %v355
    %v408 = vtanh.pop %v356
    %411 = vrot.lane.b32.xlu0 %v407, 64
    %v412 = vpop.permute.xlu0 %411
    %413 = vrot.lane.b32.xlu0 %v408, 64
    %v414 = vpop.permute.xlu0 %413
    %v417 = vmul.f32 %v391, %v412
    %v418 = vmul.f32 %v406, %v414
    %421 = vrot.lane.b32.xlu0 %v417, 32
    %v422 = vpop.permute.xlu0 %421
    %423 = vrot.lane.b32.xlu0 %v418, 32
    %v424 = vpop.permute.xlu0 %423
    %vm427 = vcmask 261120
    %428 = vst.msk [vmem:[#allocation2] sm:$0xff] %vm427, %v422
    %429 = vst.msk [vmem:[#allocation2 + $0x8] sm:$0xff] %vm427, %v424
    %430 = vrot.lane.b32.xlu0 %v355, 96
    %v431 = vpop.permute.xlu0 %430
    %432 = vrot.lane.b32.xlu0 %v356, 96
    %v433 = vpop.permute.xlu0 %432
    %436 = vst.msk [vmem:[#allocation3] sm:$0xff] %vm427, %v431
    %437 = vst.msk [vmem:[#allocation3 + $0x8] sm:$0xff] %vm427, %v433
    %v438 = vsel %vm427, %v422, %v355
    %v439 = vsel %vm427, %v424, %v356
    %vm440 = vcmask 523264
    %441 = vst.msk [vmem:[#allocation10] sm:$0xff] %vm440, %v438
    %442 = vst.msk [vmem:[#allocation10 + $0x8] sm:$0xff] %vm440, %v439
    // Predicated region
    $region46: #{tpu_custom_call.1} parent=1 // pred_check
      _
    $region47: #{tpu_custom_call.1} parent=1 // pred_check_branch
      %444 = sbr.rel (0) target = $region49
    $region48: #{tpu_custom_call.1} parent=1 // pred_region
      %446 = vsyncadd [#allocation6], 0
      %s447 = sshll.u32 [#allocation10], 4
      %s448 = int_to_ptr.vmem [resolvable:$true] %s447
      %s449 = sshll.u32 %s7, 4
      %s450 = int_to_ptr.hbm [resolvable:$true] %s449
      %455 = dma.vmem_to_hbm [thread:$0]  %s448, 256, %s450, [#allocation6], 128, 128, 8
    $region49: #{tpu_custom_call.1} parent=1 // pred_fallthru
      _
    // Predicated region
    $region50: #{tpu_custom_call.1} parent=1 // pred_check
      _
    $region51: #{tpu_custom_call.1} parent=1 // pred_check_branch
      %457 = sbr.rel (0) target = $region53
    $region52: #{tpu_custom_call.1} parent=1 // pred_region
      %459 = dma.done [#allocation6], 256
    $region53: #{tpu_custom_call.1} parent=1 // pred_fallthru
      _
    %460 = vsyncpa [#allocation5], 1
    %461 = vsyncpa [#allocation8], 1
    %462 = vsyncpa [#allocation6], 1

</llo_original>
